<compile_context>
chip_gen: v5e
topology: v5e:2x2
jax: 0.10.0
libtpu: 0.0.40
codegen_flags: <defaults>
</compile_context>

<pallas_src>
import functools

import jax
import jax.numpy as jnp
from jax.experimental import pallas as pl
from jax.experimental.pallas import tpu as pltpu


def _distill_kl_kernel(ys_ref, yt_ref, out_ref, *, T: float, B: int):
    tb = ys_ref.shape[0]  # rows in this block (may overhang the true batch)

    inv_T = jnp.float32(1.0 / T)
    ys = ys_ref[...].astype(jnp.float32) * inv_T
    yt = yt_ref[...].astype(jnp.float32) * inv_T

    # Stable log-sum-exp pieces for student (log-softmax) along the class axis.
    ys_max = jnp.max(ys, axis=-1, keepdims=True)
    ys_sh = ys - ys_max
    log_z_s = jnp.log(jnp.sum(jnp.exp(ys_sh), axis=-1, keepdims=True))

    # Stable softmax pieces for teacher along the class axis.
    yt_max = jnp.max(yt, axis=-1, keepdims=True)
    yt_sh = yt - yt_max
    exp_t = jnp.exp(yt_sh)
    z_t = jnp.sum(exp_t, axis=-1, keepdims=True)
    log_z_t = jnp.log(z_t)

    # Row KL: sum_c p_t * (log p_t - log p_s)
    #       = (sum_c exp_t * (yt_sh - ys_sh)) / z_t - (log z_t - log z_s)
    # -> only one exact divide per row (B divides instead of B*C).
    num = jnp.sum(exp_t * (yt_sh - ys_sh), axis=-1, keepdims=True)  # [tb, 1]
    row_kl = num / z_t - (log_z_t - log_z_s)                        # [tb, 1]

    # Mask rows beyond the true batch (the last / only block may overhang).
    row_idx = pl.program_id(0) * tb + jax.lax.broadcasted_iota(
        jnp.int32, (tb, 1), 0)
    row_kl = jnp.where(row_idx < B, row_kl, jnp.float32(0.0))

    partial = jnp.sum(row_kl)  # this block's contribution (unscaled)
    # Lane-dense (1, 8, 128) partial-sum block -> unmasked vector stores.
    out_ref[...] = jnp.full(out_ref.shape, partial, dtype=jnp.float32)


def _choose_block_rows(B: int, C: int, itemsize: int) -> int:
    """Pick a batch tile so 2 inputs x 2 pipeline buffers stay under ~24 MiB."""
    budget_bytes = 24 * 1024 * 1024
    per_tile_bytes = budget_bytes // 4          # 2 inputs x 2 buffers
    tb = per_tile_bytes // max(1, C * itemsize)
    tb = max(8, min(int(tb), 2048))
    tb = (tb // 8) * 8                          # sublane multiple of 8
    b_pad = ((B + 7) // 8) * 8                  # never exceed (padded) batch
    return max(8, min(tb, b_pad))


def distill_kl(y_s: jax.Array, y_t: jax.Array, T: float,
               block_rows: int | None = None) -> jax.Array:
    """KL distillation loss. y_s, y_t: [B, C] logits (f32 or bf16). Scalar f32."""
    assert y_s.shape == y_t.shape and y_s.ndim == 2
    B, C = y_s.shape
    itemsize = max(jnp.dtype(y_s.dtype).itemsize, jnp.dtype(y_t.dtype).itemsize)
    TB = block_rows if block_rows is not None else _choose_block_rows(B, C, itemsize)
    assert TB % 8 == 0
    num_blocks = pl.cdiv(B, TB)

    partials = pl.pallas_call(
        functools.partial(_distill_kl_kernel, T=float(T), B=B),
        out_shape=jax.ShapeDtypeStruct((num_blocks, 8, 128), jnp.float32),
        grid=(num_blocks,),
        in_specs=[
            pl.BlockSpec((TB, C), lambda i: (i, 0)),
            pl.BlockSpec((TB, C), lambda i: (i, 0)),
        ],
        out_specs=pl.BlockSpec((1, 8, 128), lambda i: (i, 0, 0)),
        compiler_params=pltpu.CompilerParams(
            dimension_semantics=("parallel",),
            vmem_limit_bytes=32 * 1024 * 1024,
        ),
    )(y_s, y_t)

    scale = jnp.float32(float(T) * float(T) / B)
    return jnp.sum(partials[:, 0, 0]) * scale


def _distill_kl_ref(y_s, y_t, T):
    # Pure-JAX reference for sanity checking.
    y_s = y_s.astype(jnp.float32)
    y_t = y_t.astype(jnp.float32)
    log_p_s = jax.nn.log_softmax(y_s / T, axis=1)
    p_t = jax.nn.softmax(y_t / T, axis=1)
    log_p_t = jax.nn.log_softmax(y_t / T, axis=1)
    return jnp.sum(p_t * (log_p_t - log_p_s)) * T**2 / y_s.shape[0]


if __name__ == "__main__":
    T = 4.0

    # 1) Small shape consistent with the module: (batch, num_classes) logits.
    B, C = 8, 32
    key = jax.random.PRNGKey(0)
    k1, k2, k3, k4 = jax.random.split(key, 4)
    y_s = jax.random.normal(k1, (B, C), dtype=jnp.float32)
    y_t = jax.random.normal(k2, (B, C), dtype=jnp.float32)

    loss = jax.block_until_ready(distill_kl(y_s, y_t, T))
    ref = jax.block_until_ready(_distill_kl_ref(y_s, y_t, T))
    assert jnp.allclose(loss, ref, rtol=1e-5, atol=1e-5), (loss, ref)

    # 2) Multi-block grid + ragged batch (exercises pipelining and row masking).
    B2, C2 = 300, 96
    y_s2 = jax.random.normal(k3, (B2, C2), dtype=jnp.float32)
    y_t2 = jax.random.normal(k4, (B2, C2), dtype=jnp.float32)
    loss2 = jax.block_until_ready(distill_kl(y_s2, y_t2, T, block_rows=128))
    ref2 = jax.block_until_ready(_distill_kl_ref(y_s2, y_t2, T))
    assert jnp.allclose(loss2, ref2, rtol=1e-5, atol=1e-5), (loss2, ref2)

    print("KERNEL_OK")
</pallas_src>

<mosaic_0001>
module attributes {stable_mosaic.version = 11 : i64} {
  func.func @_distill_kl_kernel(%arg0: i32, %arg1: memref<8x32xf32, #tpu.memory_space<vmem>>, %arg2: memref<8x32xf32, #tpu.memory_space<vmem>>, %arg3: memref<1x8x128xf32, #tpu.memory_space<vmem>>) attributes {dimension_semantics = [#tpu.dimension_semantics<parallel>], iteration_bounds = array<i64: 1>, scalar_prefetch = 0 : i64, scratch_operands = 0 : i64, tpu.core_type = #tpu.core_type<tc>, window_params = [{transform_indices = @transform_0, window_bounds = array<i64: 8, 32>}, {transform_indices = @transform_1, window_bounds = array<i64: 8, 32>}, {transform_indices = @transform_2, window_bounds = array<i64: 1, 8, 128>}]} {
    %c0 = arith.constant 0 : index
    %c0_0 = arith.constant 0 : index
    %0 = vector.load %arg1[%c0, %c0_0] : memref<8x32xf32, #tpu.memory_space<vmem>>, vector<8x32xf32>
    %cst = arith.constant 2.500000e-01 : f32
    %1 = vector.broadcast %cst : f32 to vector<8x32xf32>
    %2 = arith.mulf %0, %1 : vector<8x32xf32>
    %c0_1 = arith.constant 0 : index
    %c0_2 = arith.constant 0 : index
    %3 = vector.load %arg2[%c0_1, %c0_2] : memref<8x32xf32, #tpu.memory_space<vmem>>, vector<8x32xf32>
    %cst_3 = arith.constant 2.500000e-01 : f32
    %4 = vector.broadcast %cst_3 : f32 to vector<8x32xf32>
    %5 = arith.mulf %3, %4 : vector<8x32xf32>
    %cst_4 = arith.constant dense<0xFF800000> : vector<8xf32>
    %6 = vector.multi_reduction <maximumf>, %2, %cst_4 [1] : vector<8x32xf32> to vector<8xf32>
    %7 = vector.shape_cast %6 : vector<8xf32> to vector<8x1xf32>
    %8 = vector.broadcast %7 : vector<8x1xf32> to vector<8x32xf32>
    %9 = arith.subf %2, %8 : vector<8x32xf32>
    %10 = math.exp %9 : vector<8x32xf32>
    %cst_5 = arith.constant dense<0.000000e+00> : vector<8xf32>
    %11 = vector.multi_reduction <add>, %10, %cst_5 [1] : vector<8x32xf32> to vector<8xf32>
    %12 = vector.shape_cast %11 : vector<8xf32> to vector<8x1xf32>
    %13 = math.log %12 : vector<8x1xf32>
    %cst_6 = arith.constant dense<0xFF800000> : vector<8xf32>
    %14 = vector.multi_reduction <maximumf>, %5, %cst_6 [1] : vector<8x32xf32> to vector<8xf32>
    %15 = vector.shape_cast %14 : vector<8xf32> to vector<8x1xf32>
    %16 = vector.broadcast %15 : vector<8x1xf32> to vector<8x32xf32>
    %17 = arith.subf %5, %16 : vector<8x32xf32>
    %18 = math.exp %17 : vector<8x32xf32>
    %cst_7 = arith.constant dense<0.000000e+00> : vector<8xf32>
    %19 = vector.multi_reduction <add>, %18, %cst_7 [1] : vector<8x32xf32> to vector<8xf32>
    %20 = vector.shape_cast %19 : vector<8xf32> to vector<8x1xf32>
    %21 = math.log %20 : vector<8x1xf32>
    %22 = arith.subf %17, %9 : vector<8x32xf32>
    %23 = arith.mulf %18, %22 : vector<8x32xf32>
    %cst_8 = arith.constant dense<0.000000e+00> : vector<8xf32>
    %24 = vector.multi_reduction <add>, %23, %cst_8 [1] : vector<8x32xf32> to vector<8xf32>
    %25 = vector.shape_cast %24 : vector<8xf32> to vector<8x1xf32>
    %26 = arith.divf %25, %20 : vector<8x1xf32>
    %27 = arith.subf %21, %13 : vector<8x1xf32>
    %28 = arith.subf %26, %27 : vector<8x1xf32>
    %c8_i32 = arith.constant 8 : i32
    %29 = arith.muli %arg0, %c8_i32 : i32
    %30 = tpu.iota {dimensions = array<i32: 0>} : vector<8x1xi32>
    %31 = vector.broadcast %29 : i32 to vector<8x1xi32>
    %32 = arith.addi %31, %30 : vector<8x1xi32>
    %c8_i32_9 = arith.constant 8 : i32
    %33 = vector.broadcast %c8_i32_9 : i32 to vector<8x1xi32>
    %34 = arith.cmpi slt, %32, %33 : vector<8x1xi32>
    %cst_10 = arith.constant 0.000000e+00 : f32
    %35 = vector.broadcast %cst_10 : f32 to vector<8x1xf32>
    %36 = arith.select %34, %28, %35 : vector<8x1xi1>, vector<8x1xf32>
    %37 = vector.shape_cast %36 : vector<8x1xf32> to vector<1x8x1xf32>
    %cst_11 = arith.constant dense<0.000000e+00> : vector<1xf32>
    %38 = vector.multi_reduction <add>, %37, %cst_11 [1, 2] : vector<1x8x1xf32> to vector<1xf32>
    %39 = vector.shape_cast %38 : vector<1xf32> to vector<1x1x1xf32>
    %40 = vector.extract %39[0, 0, 0] : f32 from vector<1x1x1xf32>
    %41 = vector.broadcast %40 : f32 to vector<1x8x128xf32>
    %c0_12 = arith.constant 0 : index
    %c0_13 = arith.constant 0 : index
    %c0_14 = arith.constant 0 : index
    %42 = vector.load %arg3[%c0_12, %c0_13, %c0_14] : memref<1x8x128xf32, #tpu.memory_space<vmem>>, vector<1x8x128xf32>
    tpu.vector_store %arg3[%c0_12, %c0_13, %c0_14], %41 {strides = array<i32>} : memref<1x8x128xf32, #tpu.memory_space<vmem>>, vector<1x8x128xf32>,
    return
  }
  func.func @transform_0(%arg0: i32) -> (i32, i32) {
    %c0_i32 = arith.constant 0 : i32
    %c0_i32_0 = arith.constant 0 : i32
    return %arg0, %c0_i32 : i32, i32
  }
  func.func @transform_1(%arg0: i32) -> (i32, i32) {
    %c0_i32 = arith.constant 0 : i32
    %c0_i32_0 = arith.constant 0 : i32
    return %arg0, %c0_i32 : i32, i32
  }
  func.func @transform_2(%arg0: i32) -> (i32, i32, i32) {
    %c0_i32 = arith.constant 0 : i32
    %c0_i32_0 = arith.constant 0 : i32
    %c0_i32_1 = arith.constant 0 : i32
    return %arg0, %c0_i32, %c0_i32_0 : i32, i32, i32
  }
}

</mosaic_0001>

<llo_original>
// kernel: tpu_custom_call.1
$region0: #{tpu_custom_call.1}
  #allocation0 [shape = 'u32[]', space=smem, size = 0x4, offset = 0x4, fixed_abs, tag = 'smem constant byte address 0x4 - core index']
  #allocation1 [shape = 'u32[72,128]{1,0:T(1,128)}', space=vmem, size = 0x9000, scoped, tag = 'internal scratch']
  %s0 = inlined_call_operand.hbm [shape: f32[8,32], index: 0, kind: input, shape index: {}]
  %s1 = inlined_call_operand.hbm [shape: f32[8,32], index: 1, kind: input, shape index: {}]
  %s2 = inlined_call_operand.hbm [shape: f32[1,8,128], index: 2, kind: output, shape index: {}]
  %s3 = sld [smem:[#allocation0]]
  $region26: #{tpu_custom_call.1} parent=0
    _
  %s5 = ssub.s32 1, %s3
  %s6 = scalar_select 0, %s5, %s3
  $region1: #{tpu_custom_call.1} parent=0
    #allocation2 [shape = 'u8[4096]{0}', space=vmem, size = 0x1000, scoped, tag = 'input window, operand 0, single buffered']
    #allocation3 [shape = 's32[1]{0}', space=sflag, size = 0x4, scoped, tag = 'scoped memory for tpu_custom_call.1']
    #allocation4 [shape = 's32[1]{0}', space=sflag, size = 0x4, scoped, tag = 'scoped memory for tpu_custom_call.1']
    #allocation5 [shape = 'u8[4096]{0}', space=vmem, size = 0x1000, scoped, tag = 'input window, operand 1, single buffered']
    #allocation6 [shape = 's32[1]{0}', space=sflag, size = 0x4, scoped, tag = 'scoped memory for tpu_custom_call.1']
    #allocation7 [shape = 'u8[4096]{0}', space=vmem, size = 0x1000, scoped, tag = 'output window, operand 0, single buffered']
    %7 = vsyncpa [#allocation3], 0
    %8 = vsyncpa [#allocation6], 0
    %9 = vsyncpa [#allocation4], 0
    // Predicated region
    $region2: #{tpu_custom_call.1} parent=1 // pred_check
      _
    $region3: #{tpu_custom_call.1} parent=1 // pred_check_branch
      %11 = sbr.rel (0) target = $region5
    $region4: #{tpu_custom_call.1} parent=1 // pred_region
      %13 = vsyncadd [#allocation3], 0
      %s15 = sshll.u32 %s0, 4
      %s16 = int_to_ptr.hbm [resolvable:$true] %s15
      %s17 = sshll.u32 [#allocation2], 4
      %s18 = int_to_ptr.vmem [resolvable:$true] %s17
      %20 = dma.hbm_to_vmem [thread:$0]  %s16, 128, %s18, [#allocation3]
    $region5: #{tpu_custom_call.1} parent=1 // pred_fallthru
      _
    // Predicated region
    $region6: #{tpu_custom_call.1} parent=1 // pred_check
      _
    $region7: #{tpu_custom_call.1} parent=1 // pred_check_branch
      %22 = sbr.rel (0) target = $region9
    $region8: #{tpu_custom_call.1} parent=1 // pred_region
      %24 = vsyncadd [#allocation6], 0
      %s26 = sshll.u32 %s1, 4
      %s27 = int_to_ptr.hbm [resolvable:$true] %s26
      %s28 = sshll.u32 [#allocation5], 4
      %s29 = int_to_ptr.vmem [resolvable:$true] %s28
      %31 = dma.hbm_to_vmem [thread:$0]  %s27, 128, %s29, [#allocation6]
    $region9: #{tpu_custom_call.1} parent=1 // pred_fallthru
      _
    // Predicated region
    $region10: #{tpu_custom_call.1} parent=1 // pred_check
      _
    $region11: #{tpu_custom_call.1} parent=1 // pred_check_branch
      %33 = sbr.rel (0) target = $region13
    $region12: #{tpu_custom_call.1} parent=1 // pred_region
      %35 = dma.done [#allocation3], 128
    $region13: #{tpu_custom_call.1} parent=1 // pred_fallthru
      _
    // Predicated region
    $region14: #{tpu_custom_call.1} parent=1 // pred_check
      _
    $region15: #{tpu_custom_call.1} parent=1 // pred_check_branch
      %37 = sbr.rel (0) target = $region17
    $region16: #{tpu_custom_call.1} parent=1 // pred_region
      %39 = dma.done [#allocation6], 128
    $region17: #{tpu_custom_call.1} parent=1 // pred_fallthru
      _
    %v40 = vld [vmem:[#allocation2] sm:$0xff]
    %v41 = vmul.f32 %v40, 0.25
    %v42 = vld [vmem:[#allocation5] sm:$0xff]
    %v43 = vmul.f32 %v42, 0.25
    %vm44 = vcmask 261120
    %v45 = vsel %vm44, %v41, -inf
    %46 = vmax.xlane.f32.xlu0 %v45
    %v47 = vpop.xlane.xlu0 %46
    %v48 = vsub.f32 %v41, %v47
    %v49 = vmul.f32 %v48, 1.442695
    %v50 = vpow.pop %v49
    %v51 = vsel %vm44, %v50, 0.0
    %52 = vadd.xlane.f32.xlu0 %v51
    %v53 = vpop.xlane.xlu0 %52
    %v54 = vlog2.pop %v53
    %v55 = vmul.f32 %v54, 0.6931472
    %v56 = vsel %vm44, %v43, -inf
    %57 = vmax.xlane.f32.xlu0 %v56
    %v58 = vpop.xlane.xlu0 %57
    %v59 = vsub.f32 %v43, %v58
    %v60 = vmul.f32 %v59, 1.442695
    %v61 = vpow.pop %v60
    %v62 = vsel %vm44, %v61, 0.0
    %63 = vadd.xlane.f32.xlu0 %v62
    %v64 = vpop.xlane.xlu0 %63
    %v65 = vlog2.pop %v64
    %v66 = vmul.f32 %v65, 0.6931472
    %v67 = vsub.f32 %v59, %v48
    %v68 = vmul.f32 %v61, %v67
    %v69 = vsel %vm44, %v68, 0.0
    %70 = vadd.xlane.f32.xlu0 %v69
    %v71 = vpop.xlane.xlu0 %70
    %v72 = vrcp.pop %v64
    %v73 = vmul.f32 %v64, %v72
    %v74 = vsub.f32 1.0, %v73
    %v75 = vmul.f32 %v72, %v74
    %v76 = vadd.f32 %v72, %v75
    %vm77 = vweird.f32 %v64
    %vm78 = vweird.f32 %v72
    %vm79 = vmor %vm77, %vm78
    %v80 = vsel %vm79, %v72, %v76
    %v81 = vand.u32 2147483647, %v64
    %vm82 = vcmp.eq.f32.partialorder %v81, 8.507059e+37
    %v83 = vand.u32 %v64, 2147483648
    %v84 = vor.u32 1.1754944e-38, %v83
    %v85 = vsel %vm82, %v84, %v80
    %v86 = vmul.f32 %v71, %v85
    %v87 = vsub.f32 %v66, %v55
    %v88 = vsub.f32 %v86, %v87
    %s89 = smul.u32 0, 8
    %v90 = vlaneseq
    %v91 = vshrl.u32 %v90, 7
    %v92 = vstv %s89
    %v93 = vadd.s32 %v92, %v91
    %vm94 = vcmp.lt.s32.totalorder %v93, 8
    %v95 = vsel %vm94, %v88, 0.0
    %vm96 = vcmask 7168
    %v97 = vsel %vm96, %v95, 0.0
    %98 = vadd.xlane.f32.xlu0 %v97
    %v99 = vpop.xlane.xlu0 %98
    %v100 = vrot.slane %v99, 4
    %v101 = vadd.f32 %v99, %v100
    %v102 = vrot.slane %v101, 2
    %v103 = vadd.f32 %v101, %v102
    %v104 = vrot.slane %v103, 1
    %v105 = vadd.f32 %v103, %v104
    %s106 = vtos %v105
    %v107 = vstv %s106
    %108 = vst [vmem:[#allocation7] sm:$0xff] %v107
    // Predicated region
    $region18: #{tpu_custom_call.1} parent=1 // pred_check
      _
    $region19: #{tpu_custom_call.1} parent=1 // pred_check_branch
      %110 = sbr.rel (0) target = $region21
    $region20: #{tpu_custom_call.1} parent=1 // pred_region
      %112 = vsyncadd [#allocation4], 0
      %s114 = sshll.u32 [#allocation7], 4
      %s115 = int_to_ptr.vmem [resolvable:$true] %s114
      %s116 = sshll.u32 %s2, 4
      %s117 = int_to_ptr.hbm [resolvable:$true] %s116
      %119 = dma.vmem_to_hbm [thread:$0]  %s115, 128, %s117, [#allocation4]
    $region21: #{tpu_custom_call.1} parent=1 // pred_fallthru
      _
    // Predicated region
    $region22: #{tpu_custom_call.1} parent=1 // pred_check
      _
    $region23: #{tpu_custom_call.1} parent=1 // pred_check_branch
      %121 = sbr.rel (0) target = $region25
    $region24: #{tpu_custom_call.1} parent=1 // pred_region
      %123 = dma.done [#allocation4], 128
    $region25: #{tpu_custom_call.1} parent=1 // pred_fallthru
      _
    %124 = vsyncpa [#allocation3], 1
    %125 = vsyncpa [#allocation6], 1
    %126 = vsyncpa [#allocation4], 1

</llo_original>
